<compile_context>
chip_gen: v7x
topology: tpu7x:2x2x1
jax: 0.10.0
libtpu: 0.0.40
codegen_flags: <defaults>
</compile_context>

<pallas_src>
import math
import jax
import jax.numpy as jnp
from jax.experimental import pallas as pl
from jax.experimental.pallas import tpu as pltpu

MAXOUT_K = 2


# ----------------------------------------------------------------------------
# Fused Pallas kernel (whole network in one call; everything stays in VMEM)
# ----------------------------------------------------------------------------
def _maxout_from_cat(z, k_pieces, n_out):
    """z: (B, k*n_out) f32 with pieces laid out as contiguous n_out chunks."""
    out = z[:, 0:n_out]
    for j in range(1, k_pieces):
        out = jnp.maximum(out, z[:, j * n_out:(j + 1) * n_out])
    return out


def make_fused_kernel(hidden_sizes, k_pieces):
    """Builds the fused kernel.

    Ref order: (x, w1, b1, w2, b2, ..., wf, bf, o)
      x:  (B, n_in)            bf16
      wi: (n_in_i, K*n_out_i)  bf16   (maxout pieces concatenated on lanes)
      bi: (1, K*n_out_i)       f32
      wf: (n_last, n_final)    bf16
      bf: (1, n_final)         f32
      o:  (B, n_final)         f32
    """
    n_maxout = len(hidden_sizes)

    def kernel(x_ref, *refs):
        o_ref = refs[-1]
        h = x_ref[...]  # bf16 activations feeding the MXU
        for i, n_out in enumerate(hidden_sizes):
            w_ref = refs[2 * i]
            b_ref = refs[2 * i + 1]
            # One wide matmul for all K pieces (bf16 x bf16 -> f32 accumulate).
            z = jnp.dot(h, w_ref[...], preferred_element_type=jnp.float32)
            z = z + b_ref[...]                       # f32 VPU
            h_f32 = _maxout_from_cat(z, k_pieces, n_out)   # f32 VPU max
            h = h_f32.astype(jnp.bfloat16)           # back to bf16 for next MXU
        wf_ref = refs[2 * n_maxout]
        bf_ref = refs[2 * n_maxout + 1]
        z = jnp.dot(h, wf_ref[...], preferred_element_type=jnp.float32)
        z = z + bf_ref[...]
        o_ref[...] = jax.nn.sigmoid(z)               # EUP

    return kernel


def dnet_gf2014_pallas(x, params):
    """Fused forward pass. x: (B, C, H, W)."""
    B = x.shape[0]
    h = x.reshape(B, -1).astype(jnp.bfloat16)

    hidden_sizes = []
    args = [h]
    for (w, b) in params["maxout"]:
        k, n_in, n_out = w.shape
        hidden_sizes.append(n_out)
        # (K, n_in, n_out) -> (n_in, K*n_out): column chunk k == W[k]
        w_cat = jnp.transpose(w, (1, 0, 2)).reshape(n_in, k * n_out)
        b_cat = b.reshape(1, k * n_out)
        args.append(w_cat.astype(jnp.bfloat16))
        args.append(b_cat.astype(jnp.float32))
    wf, bf = params["final"]
    args.append(wf.astype(jnp.bfloat16))
    args.append(bf.astype(jnp.float32))

    n_final = wf.shape[1]
    kernel = make_fused_kernel(tuple(hidden_sizes), MAXOUT_K)

    # All arrays are tiny (<1 MiB total) -> whole-array VMEM blocks, no grid.
    # TODO(synk): if layer_sz[0] or B grows large, add a batch grid axis
    # ("parallel") with resident weight BlockSpecs and tile the reduction dim.
    return pl.pallas_call(
        kernel,
        out_shape=jax.ShapeDtypeStruct((B, n_final), jnp.float32),
        in_specs=[pl.BlockSpec(memory_space=pltpu.MemorySpace.VMEM)] * len(args),
        out_specs=pl.BlockSpec(memory_space=pltpu.MemorySpace.VMEM),
    )(*args)


# ----------------------------------------------------------------------------
# Parameters: mirror PyTorch nn.Linear default init
# ----------------------------------------------------------------------------
def init_params(layer_sz, key):
    params = {"maxout": [], "final": None}
    nlayers = len(layer_sz) - 1
    keys = jax.random.split(key, nlayers + 1)
    # middle: Maxout1d(layer_sz[i], layer_sz[i+1]) for i in range(nlayers - 1)
    for i in range(nlayers - 1):
        n_in, n_out = layer_sz[i], layer_sz[i + 1]
        bound = 1.0 / math.sqrt(n_in)
        kw, kb = jax.random.split(keys[i])
        w = jax.random.uniform(kw, (MAXOUT_K, n_in, n_out), jnp.float32, -bound, bound)
        b = jax.random.uniform(kb, (MAXOUT_K, 1, n_out), jnp.float32, -bound, bound)
        params["maxout"].append((w, b))
    # final: Linear(layer_sz[-2], layer_sz[-1]) + Sigmoid
    n_in, n_out = layer_sz[-2], layer_sz[-1]
    bound = 1.0 / math.sqrt(n_in)
    kw, kb = jax.random.split(keys[-1])
    wf = jax.random.uniform(kw, (n_in, n_out), jnp.float32, -bound, bound)
    bf = jax.random.uniform(kb, (1, n_out), jnp.float32, -bound, bound)
    params["final"] = (wf, bf)
    return params


@jax.jit
def dnet_gf2014_forward(x, params):
    return dnet_gf2014_pallas(x, params)


def dnet_gf2014_reference(x, params):
    h = x.reshape(x.shape[0], -1).astype(jnp.float32)
    for (w, b) in params["maxout"]:
        zs = jnp.stack([h @ w[j] + b[j] for j in range(w.shape[0])], axis=0)
        h = jnp.max(zs, axis=0)
    wf, bf = params["final"]
    return jax.nn.sigmoid(h @ wf + bf)


if __name__ == "__main__":
    key = jax.random.PRNGKey(0)
    kx, kp = jax.random.split(key)

    # image_sz = (C, H, W) = (4, 16, 16); layer_sz = [C*H*W, 64, 32, 1]
    image_sz = (4, 16, 16)
    layer_sz = [image_sz[0] * image_sz[1] * image_sz[2], 64, 32, 1]
    batch = 2

    x = jax.random.normal(kx, (batch,) + image_sz, dtype=jnp.float32)
    params = init_params(layer_sz, kp)

    out = dnet_gf2014_forward(x, params)
    out = jax.block_until_ready(out)

    ref = dnet_gf2014_reference(x, params)
    assert out.shape == (batch, layer_sz[-1]), out.shape
    assert jnp.allclose(out, ref, rtol=1e-2, atol=1e-2), (out, ref)

    print("KERNEL_OK")
</pallas_src>

<mosaic_0001>
module attributes {stable_mosaic.version = 11 : i64} {
  func.func @kernel(%arg0: memref<2x1024xbf16, #tpu.memory_space<vmem>>, %arg1: memref<1024x128xbf16, #tpu.memory_space<vmem>>, %arg2: memref<1x128xf32, #tpu.memory_space<vmem>>, %arg3: memref<64x64xbf16, #tpu.memory_space<vmem>>, %arg4: memref<1x64xf32, #tpu.memory_space<vmem>>, %arg5: memref<32x1xbf16, #tpu.memory_space<vmem>>, %arg6: memref<1x1xf32, #tpu.memory_space<vmem>>, %arg7: memref<2x1xf32, #tpu.memory_space<vmem>>) attributes {dimension_semantics = [], scalar_prefetch = 0 : i64, scratch_operands = 0 : i64, tpu.core_type = #tpu.core_type<tc>} {
    %c0 = arith.constant 0 : index
    %c0_0 = arith.constant 0 : index
    %0 = vector.load %arg0[%c0, %c0_0] : memref<2x1024xbf16, #tpu.memory_space<vmem>>, vector<2x1024xbf16>
    %c0_1 = arith.constant 0 : index
    %c0_2 = arith.constant 0 : index
    %1 = vector.load %arg1[%c0_1, %c0_2] : memref<1024x128xbf16, #tpu.memory_space<vmem>>, vector<1024x128xbf16>
    %cst = arith.constant dense<0.000000e+00> : vector<2x128xf32>
    %2 = tpu.matmul %0, %1, %cst {dimension_numbers = #tpu.dot_dimension_numbers<[1], [0], [0], [1], [0, 0, 1, 1], [], []>} : vector<2x1024xbf16>, vector<1024x128xbf16>, vector<2x128xf32> -> vector<2x128xf32>
    %c0_3 = arith.constant 0 : index
    %c0_4 = arith.constant 0 : index
    %3 = vector.load %arg2[%c0_3, %c0_4] : memref<1x128xf32, #tpu.memory_space<vmem>>, vector<1x128xf32>
    %4 = vector.broadcast %3 : vector<1x128xf32> to vector<2x128xf32>
    %5 = arith.addf %2, %4 : vector<2x128xf32>
    %6 = vector.extract_strided_slice %5 {offsets = [0, 0], sizes = [2, 64], strides = [1, 1]} : vector<2x128xf32> to vector<2x64xf32>
    %7 = vector.extract_strided_slice %5 {offsets = [0, 64], sizes = [2, 64], strides = [1, 1]} : vector<2x128xf32> to vector<2x64xf32>
    %8 = arith.maximumf %6, %7 : vector<2x64xf32>
    %9 = arith.truncf %8 : vector<2x64xf32> to vector<2x64xbf16>
    %c0_5 = arith.constant 0 : index
    %c0_6 = arith.constant 0 : index
    %10 = vector.load %arg3[%c0_5, %c0_6] : memref<64x64xbf16, #tpu.memory_space<vmem>>, vector<64x64xbf16>
    %cst_7 = arith.constant dense<0.000000e+00> : vector<2x64xf32>
    %11 = tpu.matmul %9, %10, %cst_7 {dimension_numbers = #tpu.dot_dimension_numbers<[1], [0], [0], [1], [0, 0, 1, 1], [], []>} : vector<2x64xbf16>, vector<64x64xbf16>, vector<2x64xf32> -> vector<2x64xf32>
    %c0_8 = arith.constant 0 : index
    %c0_9 = arith.constant 0 : index
    %12 = vector.load %arg4[%c0_8, %c0_9] : memref<1x64xf32, #tpu.memory_space<vmem>>, vector<1x64xf32>
    %13 = vector.broadcast %12 : vector<1x64xf32> to vector<2x64xf32>
    %14 = arith.addf %11, %13 : vector<2x64xf32>
    %15 = vector.extract_strided_slice %14 {offsets = [0, 0], sizes = [2, 32], strides = [1, 1]} : vector<2x64xf32> to vector<2x32xf32>
    %16 = vector.extract_strided_slice %14 {offsets = [0, 32], sizes = [2, 32], strides = [1, 1]} : vector<2x64xf32> to vector<2x32xf32>
    %17 = arith.maximumf %15, %16 : vector<2x32xf32>
    %18 = arith.truncf %17 : vector<2x32xf32> to vector<2x32xbf16>
    %c0_10 = arith.constant 0 : index
    %c0_11 = arith.constant 0 : index
    %19 = vector.load %arg5[%c0_10, %c0_11] : memref<32x1xbf16, #tpu.memory_space<vmem>>, vector<32x1xbf16>
    %cst_12 = arith.constant dense<0.000000e+00> : vector<2x1xf32>
    %20 = tpu.matmul %18, %19, %cst_12 {dimension_numbers = #tpu.dot_dimension_numbers<[1], [0], [0], [1], [0, 0, 1, 1], [], []>} : vector<2x32xbf16>, vector<32x1xbf16>, vector<2x1xf32> -> vector<2x1xf32>
    %c0_13 = arith.constant 0 : index
    %c0_14 = arith.constant 0 : index
    %21 = vector.load %arg6[%c0_13, %c0_14] : memref<1x1xf32, #tpu.memory_space<vmem>>, vector<1x1xf32>
    %22 = vector.broadcast %21 : vector<1x1xf32> to vector<2x1xf32>
    %23 = arith.addf %20, %22 : vector<2x1xf32>
    %24 = arith.negf %23 : vector<2x1xf32>
    %25 = math.exp %24 : vector<2x1xf32>
    %cst_15 = arith.constant 1.000000e+00 : f32
    %26 = vector.broadcast %cst_15 : f32 to vector<2x1xf32>
    %27 = arith.addf %26, %25 : vector<2x1xf32>
    %28 = arith.divf %26, %27 : vector<2x1xf32>
    %c0_16 = arith.constant 0 : index
    %c0_17 = arith.constant 0 : index
    %29 = vector.load %arg7[%c0_16, %c0_17] : memref<2x1xf32, #tpu.memory_space<vmem>>, vector<2x1xf32>
    tpu.vector_store %arg7[%c0_16, %c0_17], %28 {strides = array<i32>} : memref<2x1xf32, #tpu.memory_space<vmem>>, vector<2x1xf32>,
    return
  }
}

</mosaic_0001>

<llo_original>
// kernel: dnet_gf2014_forward.1
$region0: #{dnet_gf2014_forward.1}
  #allocation0 [shape = 'u32[]', space=smem, size = 0x4, offset = 0x4, fixed_abs, tag = 'smem constant byte address 0x4 - core index']
  #allocation1 [shape = 'u32[144,128]{1,0:T(1,128)}', space=vmem, size = 0x12000, scoped, tag = 'internal scratch']
  #allocation2 [shape = 'f32[1,1]{1,0:T(1,128)S(1)}', space=vmem, size = 0x200, scoped, tag = 'scoped memory for dnet_gf2014_forward.1']
  %s0 = inlined_call_operand.vmem [shape: bf16[2,1024], index: 0, kind: input, shape index: {}]
  %s1 = inlined_call_operand.vmem [shape: bf16[1024,128], index: 1, kind: input, shape index: {}]
  %s2 = inlined_call_operand.vmem [shape: f32[1,128], index: 2, kind: input, shape index: {}]
  %s3 = inlined_call_operand.vmem [shape: bf16[64,64], index: 3, kind: input, shape index: {}]
  %s4 = inlined_call_operand.vmem [shape: f32[1,64], index: 4, kind: input, shape index: {}]
  %s5 = inlined_call_operand.vmem [shape: bf16[32,1], index: 5, kind: input, shape index: {}]
  %s6 = inlined_call_operand.<no memory space> [shape: f32[1,1], index: 6, kind: input, shape index: {}]
  %s7 = inlined_call_operand.vmem [shape: f32[2,1], index: 7, kind: output, shape index: {}]
  %s8 = sld [smem:[#allocation0]]
  $region38: #{dnet_gf2014_forward.1} parent=0
    _
  %s10 = ssub.s32 1, %s8
  %s11 = scalar_select 0, %s10, %s8
  %v12 = vstv %s6
  %13 = vst [vmem:[#allocation2] sm:$0x1] %v12
  // Predicated region
  $region2: #{dnet_gf2014_forward.1} parent=0 // pred_check
    _
  $region3: #{dnet_gf2014_forward.1} parent=0 // pred_check_branch
    %15 = sbr.rel (0) target = $region5
  $region4: #{dnet_gf2014_forward.1} parent=0 // pred_region
    _
  $region5: #{dnet_gf2014_forward.1} parent=0 // pred_fallthru
    _
  // Predicated region
  $region6: #{dnet_gf2014_forward.1} parent=0 // pred_check
    _
  $region7: #{dnet_gf2014_forward.1} parent=0 // pred_check_branch
    %17 = sbr.rel (0) target = $region9
  $region8: #{dnet_gf2014_forward.1} parent=0 // pred_region
    _
  $region9: #{dnet_gf2014_forward.1} parent=0 // pred_fallthru
    _
  // Predicated region
  $region10: #{dnet_gf2014_forward.1} parent=0 // pred_check
    _
  $region11: #{dnet_gf2014_forward.1} parent=0 // pred_check_branch
    %19 = sbr.rel (0) target = $region13
  $region12: #{dnet_gf2014_forward.1} parent=0 // pred_region
    _
  $region13: #{dnet_gf2014_forward.1} parent=0 // pred_fallthru
    _
  // Predicated region
  $region14: #{dnet_gf2014_forward.1} parent=0 // pred_check
    _
  $region15: #{dnet_gf2014_forward.1} parent=0 // pred_check_branch
    %21 = sbr.rel (0) target = $region17
  $region16: #{dnet_gf2014_forward.1} parent=0 // pred_region
    _
  $region17: #{dnet_gf2014_forward.1} parent=0 // pred_fallthru
    _
  // Predicated region
  $region18: #{dnet_gf2014_forward.1} parent=0 // pred_check
    _
  $region19: #{dnet_gf2014_forward.1} parent=0 // pred_check_branch
    %23 = sbr.rel (0) target = $region21
  $region20: #{dnet_gf2014_forward.1} parent=0 // pred_region
    _
  $region21: #{dnet_gf2014_forward.1} parent=0 // pred_fallthru
    _
  // Predicated region
  $region22: #{dnet_gf2014_forward.1} parent=0 // pred_check
    _
  $region23: #{dnet_gf2014_forward.1} parent=0 // pred_check_branch
    %25 = sbr.rel (0) target = $region25
  $region24: #{dnet_gf2014_forward.1} parent=0 // pred_region
    _
  $region25: #{dnet_gf2014_forward.1} parent=0 // pred_fallthru
    _
  // Predicated region
  $region26: #{dnet_gf2014_forward.1} parent=0 // pred_check
    _
  $region27: #{dnet_gf2014_forward.1} parent=0 // pred_check_branch
    %27 = sbr.rel (0) target = $region29
  $region28: #{dnet_gf2014_forward.1} parent=0 // pred_region
    _
  $region29: #{dnet_gf2014_forward.1} parent=0 // pred_fallthru
    _
  %v29 = vld [vmem:[%s0] sm:$0xff]
  %v30 = vld [vmem:[%s1] sm:$0xf]
  %v31 = vld [vmem:[%s1 + $0x4] sm:$0xf]
  %v32 = vld [vmem:[%s1 + $0x8] sm:$0xf]
  %v33 = vld [vmem:[%s1 + $0xc] sm:$0xf]
  %v34 = vld [vmem:[%s1 + $0x10] sm:$0xf]
  %v35 = vld [vmem:[%s1 + $0x14] sm:$0xf]
  %v36 = vld [vmem:[%s1 + $0x18] sm:$0xf]
  %v37 = vld [vmem:[%s1 + $0x1c] sm:$0xf]
  %v38 = vld [vmem:[%s1 + $0x20] sm:$0xf]
  %v39 = vld [vmem:[%s1 + $0x24] sm:$0xf]
  %v40 = vld [vmem:[%s1 + $0x28] sm:$0xf]
  %v41 = vld [vmem:[%s1 + $0x2c] sm:$0xf]
  %v42 = vld [vmem:[%s1 + $0x30] sm:$0xf]
  %v43 = vld [vmem:[%s1 + $0x34] sm:$0xf]
  %v44 = vld [vmem:[%s1 + $0x38] sm:$0xf]
  %v45 = vld [vmem:[%s1 + $0x3c] sm:$0xf]
  %v46 = vld [vmem:[%s1 + $0x40] sm:$0xf]
  %v47 = vld [vmem:[%s1 + $0x44] sm:$0xf]
  %v48 = vld [vmem:[%s1 + $0x48] sm:$0xf]
  %v49 = vld [vmem:[%s1 + $0x4c] sm:$0xf]
  %v50 = vld [vmem:[%s1 + $0x50] sm:$0xf]
  %v51 = vld [vmem:[%s1 + $0x54] sm:$0xf]
  %v52 = vld [vmem:[%s1 + $0x58] sm:$0xf]
  %v53 = vld [vmem:[%s1 + $0x5c] sm:$0xf]
  %v54 = vld [vmem:[%s1 + $0x60] sm:$0xf]
  %v55 = vld [vmem:[%s1 + $0x64] sm:$0xf]
  %v56 = vld [vmem:[%s1 + $0x68] sm:$0xf]
  %v57 = vld [vmem:[%s1 + $0x6c] sm:$0xf]
  %v58 = vld [vmem:[%s1 + $0x70] sm:$0xf]
  %v59 = vld [vmem:[%s1 + $0x74] sm:$0xf]
  %v60 = vld [vmem:[%s1 + $0x78] sm:$0xf]
  %v61 = vld [vmem:[%s1 + $0x7c] sm:$0xf]
  %v62 = vld [vmem:[%s1 + $0x80] sm:$0xf]
  %v63 = vld [vmem:[%s1 + $0x84] sm:$0xf]
  %v64 = vld [vmem:[%s1 + $0x88] sm:$0xf]
  %v65 = vld [vmem:[%s1 + $0x8c] sm:$0xf]
  %v66 = vld [vmem:[%s1 + $0x90] sm:$0xf]
  %v67 = vld [vmem:[%s1 + $0x94] sm:$0xf]
  %v68 = vld [vmem:[%s1 + $0x98] sm:$0xf]
  %v69 = vld [vmem:[%s1 + $0x9c] sm:$0xf]
  %v70 = vld [vmem:[%s1 + $0xa0] sm:$0xf]
  %v71 = vld [vmem:[%s1 + $0xa4] sm:$0xf]
  %v72 = vld [vmem:[%s1 + $0xa8] sm:$0xf]
  %v73 = vld [vmem:[%s1 + $0xac] sm:$0xf]
  %v74 = vld [vmem:[%s1 + $0xb0] sm:$0xf]
  %v75 = vld [vmem:[%s1 + $0xb4] sm:$0xf]
  %v76 = vld [vmem:[%s1 + $0xb8] sm:$0xf]
  %v77 = vld [vmem:[%s1 + $0xbc] sm:$0xf]
  %v78 = vld [vmem:[%s1 + $0xc0] sm:$0xf]
  %v79 = vld [vmem:[%s1 + $0xc4] sm:$0xf]
  %v80 = vld [vmem:[%s1 + $0xc8] sm:$0xf]
  %v81 = vld [vmem:[%s1 + $0xcc] sm:$0xf]
  %v82 = vld [vmem:[%s1 + $0xd0] sm:$0xf]
  %v83 = vld [vmem:[%s1 + $0xd4] sm:$0xf]
  %v84 = vld [vmem:[%s1 + $0xd8] sm:$0xf]
  %v85 = vld [vmem:[%s1 + $0xdc] sm:$0xf]
  %v86 = vld [vmem:[%s1 + $0xe0] sm:$0xf]
  %v87 = vld [vmem:[%s1 + $0xe4] sm:$0xf]
  %v88 = vld [vmem:[%s1 + $0xe8] sm:$0xf]
  %v89 = vld [vmem:[%s1 + $0xec] sm:$0xf]
  %v90 = vld [vmem:[%s1 + $0xf0] sm:$0xf]
  %v91 = vld [vmem:[%s1 + $0xf4] sm:$0xf]
  %v92 = vld [vmem:[%s1 + $0xf8] sm:$0xf]
  %v93 = vld [vmem:[%s1 + $0xfc] sm:$0xf]
  %v94 = vld [vmem:[%s1 + $0x100] sm:$0xf]
  %v95 = vld [vmem:[%s1 + $0x104] sm:$0xf]
  %v96 = vld [vmem:[%s1 + $0x108] sm:$0xf]
  %v97 = vld [vmem:[%s1 + $0x10c] sm:$0xf]
  %v98 = vld [vmem:[%s1 + $0x110] sm:$0xf]
  %v99 = vld [vmem:[%s1 + $0x114] sm:$0xf]
  %v100 = vld [vmem:[%s1 + $0x118] sm:$0xf]
  %v101 = vld [vmem:[%s1 + $0x11c] sm:$0xf]
  %v102 = vld [vmem:[%s1 + $0x120] sm:$0xf]
  %v103 = vld [vmem:[%s1 + $0x124] sm:$0xf]
  %v104 = vld [vmem:[%s1 + $0x128] sm:$0xf]
  %v105 = vld [vmem:[%s1 + $0x12c] sm:$0xf]
  %v106 = vld [vmem:[%s1 + $0x130] sm:$0xf]
  %v107 = vld [vmem:[%s1 + $0x134] sm:$0xf]
  %v108 = vld [vmem:[%s1 + $0x138] sm:$0xf]
  %v109 = vld [vmem:[%s1 + $0x13c] sm:$0xf]
  %v110 = vld [vmem:[%s1 + $0x140] sm:$0xf]
  %v111 = vld [vmem:[%s1 + $0x144] sm:$0xf]
  %v112 = vld [vmem:[%s1 + $0x148] sm:$0xf]
  %v113 = vld [vmem:[%s1 + $0x14c] sm:$0xf]
  %v114 = vld [vmem:[%s1 + $0x150] sm:$0xf]
  %v115 = vld [vmem:[%s1 + $0x154] sm:$0xf]
  %v116 = vld [vmem:[%s1 + $0x158] sm:$0xf]
  %v117 = vld [vmem:[%s1 + $0x15c] sm:$0xf]
  %v118 = vld [vmem:[%s1 + $0x160] sm:$0xf]
  %v119 = vld [vmem:[%s1 + $0x164] sm:$0xf]
  %v120 = vld [vmem:[%s1 + $0x168] sm:$0xf]
  %v121 = vld [vmem:[%s1 + $0x16c] sm:$0xf]
  %v122 = vld [vmem:[%s1 + $0x170] sm:$0xf]
  %v123 = vld [vmem:[%s1 + $0x174] sm:$0xf]
  %v124 = vld [vmem:[%s1 + $0x178] sm:$0xf]
  %v125 = vld [vmem:[%s1 + $0x17c] sm:$0xf]
  %v126 = vld [vmem:[%s1 + $0x180] sm:$0xf]
  %v127 = vld [vmem:[%s1 + $0x184] sm:$0xf]
  %v128 = vld [vmem:[%s1 + $0x188] sm:$0xf]
  %v129 = vld [vmem:[%s1 + $0x18c] sm:$0xf]
  %v130 = vld [vmem:[%s1 + $0x190] sm:$0xf]
  %v131 = vld [vmem:[%s1 + $0x194] sm:$0xf]
  %v132 = vld [vmem:[%s1 + $0x198] sm:$0xf]
  %v133 = vld [vmem:[%s1 + $0x19c] sm:$0xf]
  %v134 = vld [vmem:[%s1 + $0x1a0] sm:$0xf]
  %v135 = vld [vmem:[%s1 + $0x1a4] sm:$0xf]
  %v136 = vld [vmem:[%s1 + $0x1a8] sm:$0xf]
  %v137 = vld [vmem:[%s1 + $0x1ac] sm:$0xf]
  %v138 = vld [vmem:[%s1 + $0x1b0] sm:$0xf]
  %v139 = vld [vmem:[%s1 + $0x1b4] sm:$0xf]
  %v140 = vld [vmem:[%s1 + $0x1b8] sm:$0xf]
  %v141 = vld [vmem:[%s1 + $0x1bc] sm:$0xf]
  %v142 = vld [vmem:[%s1 + $0x1c0] sm:$0xf]
  %v143 = vld [vmem:[%s1 + $0x1c4] sm:$0xf]
  %v144 = vld [vmem:[%s1 + $0x1c8] sm:$0xf]
  %v145 = vld [vmem:[%s1 + $0x1cc] sm:$0xf]
  %v146 = vld [vmem:[%s1 + $0x1d0] sm:$0xf]
  %v147 = vld [vmem:[%s1 + $0x1d4] sm:$0xf]
  %v148 = vld [vmem:[%s1 + $0x1d8] sm:$0xf]
  %v149 = vld [vmem:[%s1 + $0x1dc] sm:$0xf]
  %v150 = vld [vmem:[%s1 + $0x1e0] sm:$0xf]
  %v151 = vld [vmem:[%s1 + $0x1e4] sm:$0xf]
  %v152 = vld [vmem:[%s1 + $0x1e8] sm:$0xf]
  %v153 = vld [vmem:[%s1 + $0x1ec] sm:$0xf]
  %v154 = vld [vmem:[%s1 + $0x1f0] sm:$0xf]
  %v155 = vld [vmem:[%s1 + $0x1f4] sm:$0xf]
  %v156 = vld [vmem:[%s1 + $0x1f8] sm:$0xf]
  %v157 = vld [vmem:[%s1 + $0x1fc] sm:$0xf]
  %v158 = vld [vmem:[%s2] sm:$0x1]
  %v160 = vlaneseq
  %v161 = vshrl.u32 %v160, 7
  %v162 = vsub.s32 0, %v161
  %v163 = vrot.slane %v158, %v162
  %v166 = vcombine.high %v29, %v29
  %v168 = vunpack.c.l.s4 1966171168
  %v169 = vunpack.c.0.s8 %v168
  %v170 = vlaneseq
  %v171 = vshrl.u32 %v170, 7
  %v172 = vsub.s32 %v169, %v171
  %v173 = vrot.slane %v29, %v172
  %v175 = vunpack.c.l.s4 1966171168
  %v176 = vunpack.c.0.s8 %v175
  %v177 = vlaneseq
  %v178 = vshrl.u32 %v177, 7
  %v179 = vsub.s32 %v176, %v178
  %v180 = vrot.slane %v166, %v179
  %v181 = vcombine.high %v173, %v173
  %v182 = vcombine.high %v180, %v180
  %v184 = vunpack.c.l.s4 1966171168
  %v185 = vunpack.c.0.s8 %v184
  %v186 = vlaneseq
  %v187 = vshrl.u32 %v186, 7
  %v188 = vsub.s32 %v185, %v187
  %v189 = vrot.slane %v173, %v188
  %v191 = vunpack.c.l.s4 1966171168
  %v192 = vunpack.c.0.s8 %v191
  %v193 = vlaneseq
  %v194 = vshrl.u32 %v193, 7
  %v195 = vsub.s32 %v192, %v194
  %v196 = vrot.slane %v180, %v195
  %v198 = vunpack.c.l.s4 1966171168
  %v199 = vunpack.c.0.s8 %v198
  %v200 = vlaneseq
  %v201 = vshrl.u32 %v200, 7
  %v202 = vsub.s32 %v199, %v201
  %v203 = vrot.slane %v181, %v202
  %v205 = vunpack.c.l.s4 1966171168
  %v206 = vunpack.c.0.s8 %v205
  %v207 = vlaneseq
  %v208 = vshrl.u32 %v207, 7
  %v209 = vsub.s32 %v206, %v208
  %v210 = vrot.slane %v182, %v209
  %v211 = vcombine.high %v189, %v189
  %v212 = vcombine.high %v196, %v196
  %v213 = vcombine.high %v203, %v203
  %v214 = vcombine.high %v210, %v210
  %v351 = vunpack.c.l.b16 %v30
  %v352 = vunpack.c.l.b16 %v31
  %v353 = vunpack.c.l.b16 %v32
  %v354 = vunpack.c.l.b16 %v33
  %v355 = vunpack.c.l.b16 %v34
  %v356 = vunpack.c.l.b16 %v35
  %v357 = vunpack.c.l.b16 %v36
  %v358 = vunpack.c.l.b16 %v37
  %v359 = vunpack.c.l.b16 %v38
  %v360 = vunpack.c.l.b16 %v39
  %v361 = vunpack.c.l.b16 %v40
  %v362 = vunpack.c.l.b16 %v41
  %v363 = vunpack.c.l.b16 %v42
  %v364 = vunpack.c.l.b16 %v43
  %v365 = vunpack.c.l.b16 %v44
  %v366 = vunpack.c.l.b16 %v45
  %v367 = vunpack.c.l.b16 %v46
  %v368 = vunpack.c.l.b16 %v47
  %v369 = vunpack.c.l.b16 %v48
  %v370 = vunpack.c.l.b16 %v49
  %v371 = vunpack.c.l.b16 %v50
  %v372 = vunpack.c.l.b16 %v51
  %v373 = vunpack.c.l.b16 %v52
  %v374 = vunpack.c.l.b16 %v53
  %v375 = vunpack.c.l.b16 %v54
  %v376 = vunpack.c.l.b16 %v55
  %v377 = vunpack.c.l.b16 %v56
  %v378 = vunpack.c.l.b16 %v57
  %v379 = vunpack.c.l.b16 %v58
  %v380 = vunpack.c.l.b16 %v59
  %v381 = vunpack.c.l.b16 %v60
  %v382 = vunpack.c.l.b16 %v61
  %v383 = vunpack.c.l.b16 %v62
  %v384 = vunpack.c.l.b16 %v63
  %v385 = vunpack.c.l.b16 %v64
  %v386 = vunpack.c.l.b16 %v65
  %v387 = vunpack.c.l.b16 %v66
  %v388 = vunpack.c.l.b16 %v67
  %v389 = vunpack.c.l.b16 %v68
  %v390 = vunpack.c.l.b16 %v69
  %v391 = vunpack.c.l.b16 %v70
  %v392 = vunpack.c.l.b16 %v71
  %v393 = vunpack.c.l.b16 %v72
  %v394 = vunpack.c.l.b16 %v73
  %v395 = vunpack.c.l.b16 %v74
  %v396 = vunpack.c.l.b16 %v75
  %v397 = vunpack.c.l.b16 %v76
  %v398 = vunpack.c.l.b16 %v77
  %v399 = vunpack.c.l.b16 %v78
  %v400 = vunpack.c.l.b16 %v79
  %v401 = vunpack.c.l.b16 %v80
  %v402 = vunpack.c.l.b16 %v81
  %v403 = vunpack.c.l.b16 %v82
  %v404 = vunpack.c.l.b16 %v83
  %v405 = vunpack.c.l.b16 %v84
  %v406 = vunpack.c.l.b16 %v85
  %v407 = vunpack.c.l.b16 %v86
  %v408 = vunpack.c.l.b16 %v87
  %v409 = vunpack.c.l.b16 %v88
  %v410 = vunpack.c.l.b16 %v89
  %v411 = vunpack.c.l.b16 %v90
  %v412 = vunpack.c.l.b16 %v91
  %v413 = vunpack.c.l.b16 %v92
  %v414 = vunpack.c.l.b16 %v93
  %v415 = vunpack.c.l.b16 %v94
  %v416 = vunpack.c.l.b16 %v95
  %v417 = vunpack.c.l.b16 %v96
  %v418 = vunpack.c.l.b16 %v97
  %v419 = vunpack.c.l.b16 %v98
  %v420 = vunpack.c.l.b16 %v99
  %v421 = vunpack.c.l.b16 %v100
  %v422 = vunpack.c.l.b16 %v101
  %v423 = vunpack.c.l.b16 %v102
  %v424 = vunpack.c.l.b16 %v103
  %v425 = vunpack.c.l.b16 %v104
  %v426 = vunpack.c.l.b16 %v105
  %v427 = vunpack.c.l.b16 %v106
  %v428 = vunpack.c.l.b16 %v107
  %v429 = vunpack.c.l.b16 %v108
  %v430 = vunpack.c.l.b16 %v109
  %v431 = vunpack.c.l.b16 %v110
  %v432 = vunpack.c.l.b16 %v111
  %v433 = vunpack.c.l.b16 %v112
  %v434 = vunpack.c.l.b16 %v113
  %v435 = vunpack.c.l.b16 %v114
  %v436 = vunpack.c.l.b16 %v115
  %v437 = vunpack.c.l.b16 %v116
  %v438 = vunpack.c.l.b16 %v117
  %v439 = vunpack.c.l.b16 %v118
  %v440 = vunpack.c.l.b16 %v119
  %v441 = vunpack.c.l.b16 %v120
  %v442 = vunpack.c.l.b16 %v121
  %v443 = vunpack.c.l.b16 %v122
  %v444 = vunpack.c.l.b16 %v123
  %v445 = vunpack.c.l.b16 %v124
  %v446 = vunpack.c.l.b16 %v125
  %v447 = vunpack.c.l.b16 %v126
  %v448 = vunpack.c.l.b16 %v127
  %v449 = vunpack.c.l.b16 %v128
  %v450 = vunpack.c.l.b16 %v129
  %v451 = vunpack.c.l.b16 %v130
  %v452 = vunpack.c.l.b16 %v131
  %v453 = vunpack.c.l.b16 %v132
  %v454 = vunpack.c.l.b16 %v133
  %v455 = vunpack.c.l.b16 %v134
  %v456 = vunpack.c.l.b16 %v135
  %v457 = vunpack.c.l.b16 %v136
  %v458 = vunpack.c.l.b16 %v137
  %v459 = vunpack.c.l.b16 %v138
  %v460 = vunpack.c.l.b16 %v139
  %v461 = vunpack.c.l.b16 %v140
  %v462 = vunpack.c.l.b16 %v141
  %v463 = vunpack.c.l.b16 %v142
  %v464 = vunpack.c.l.b16 %v143
  %v465 = vunpack.c.l.b16 %v144
  %v466 = vunpack.c.l.b16 %v145
  %v467 = vunpack.c.l.b16 %v146
  %v468 = vunpack.c.l.b16 %v147
  %v469 = vunpack.c.l.b16 %v148
  %v470 = vunpack.c.l.b16 %v149
  %v471 = vunpack.c.l.b16 %v150
  %v472 = vunpack.c.l.b16 %v151
  %v473 = vunpack.c.l.b16 %v152
  %v474 = vunpack.c.l.b16 %v153
  %v475 = vunpack.c.l.b16 %v154
  %v476 = vunpack.c.l.b16 %v155
  %v477 = vunpack.c.l.b16 %v156
  %v478 = vunpack.c.l.b16 %v157
  %v479 = vpack.c.b16 %v352, %v351
  %v480 = vpack.c.b16 %v354, %v353
  %v481 = vpack.c.b16 %v356, %v355
  %v482 = vpack.c.b16 %v358, %v357
  %v483 = vpack.c.b16 %v360, %v359
  %v484 = vpack.c.b16 %v362, %v361
  %v485 = vpack.c.b16 %v364, %v363
  %v486 = vpack.c.b16 %v366, %v365
  %v487 = vpack.c.b16 %v368, %v367
  %v488 = vpack.c.b16 %v370, %v369
  %v489 = vpack.c.b16 %v372, %v371
  %v490 = vpack.c.b16 %v374, %v373
  %v491 = vpack.c.b16 %v376, %v375
  %v492 = vpack.c.b16 %v378, %v377
  %v493 = vpack.c.b16 %v380, %v379
  %v494 = vpack.c.b16 %v382, %v381
  %v495 = vpack.c.b16 %v384, %v383
  %v496 = vpack.c.b16 %v386, %v385
  %v497 = vpack.c.b16 %v388, %v387
  %v498 = vpack.c.b16 %v390, %v389
  %v499 = vpack.c.b16 %v392, %v391
  %v500 = vpack.c.b16 %v394, %v393
  %v501 = vpack.c.b16 %v396, %v395
  %v502 = vpack.c.b16 %v398, %v397
  %v503 = vpack.c.b16 %v400, %v399
  %v504 = vpack.c.b16 %v402, %v401
  %v505 = vpack.c.b16 %v404, %v403
  %v506 = vpack.c.b16 %v406, %v405
  %v507 = vpack.c.b16 %v408, %v407
  %v508 = vpack.c.b16 %v410, %v409
  %v509 = vpack.c.b16 %v412, %v411
  %v510 = vpack.c.b16 %v414, %v413
  %v511 = vpack.c.b16 %v416, %v415
  %v512 = vpack.c.b16 %v418, %v417
  %v513 = vpack.c.b16 %v420, %v419
  %v514 = vpack.c.b16 %v422, %v421
  %v515 = vpack.c.b16 %v424, %v423
  %v516 = vpack.c.b16 %v426, %v425
  %v517 = vpack.c.b16 %v428, %v427
  %v518 = vpack.c.b16 %v430, %v429
  %v519 = vpack.c.b16 %v432, %v431
  %v520 = vpack.c.b16 %v434, %v433
  %v521 = vpack.c.b16 %v436, %v435
  %v522 = vpack.c.b16 %v438, %v437
  %v523 = vpack.c.b16 %v440, %v439
  %v524 = vpack.c.b16 %v442, %v441
  %v525 = vpack.c.b16 %v444, %v443
  %v526 = vpack.c.b16 %v446, %v445
  %v527 = vpack.c.b16 %v448, %v447
  %v528 = vpack.c.b16 %v450, %v449
  %v529 = vpack.c.b16 %v452, %v451
  %v530 = vpack.c.b16 %v454, %v453
  %v531 = vpack.c.b16 %v456, %v455
  %v532 = vpack.c.b16 %v458, %v457
  %v533 = vpack.c.b16 %v460, %v459
  %v534 = vpack.c.b16 %v462, %v461
  %v535 = vpack.c.b16 %v464, %v463
  %v536 = vpack.c.b16 %v466, %v465
  %v537 = vpack.c.b16 %v468, %v467
  %v538 = vpack.c.b16 %v470, %v469
  %v539 = vpack.c.b16 %v472, %v471
  %v540 = vpack.c.b16 %v474, %v473
  %v541 = vpack.c.b16 %v476, %v475
  %v542 = vpack.c.b16 %v478, %v477
  %607 = vmatprep.subr.bf16.mxu0 0
  %608 = vmatpush1.bf16.msra.mxu0 %v479
  %609 = vmatprep.subr.bf16.mxu0 0
  %610 = vmatpush1.bf16.msra.mxu0 %v480
  %611 = vmatprep.subr.bf16.mxu0 0
  %612 = vmatpush1.bf16.msra.mxu0 %v481
  %613 = vmatprep.subr.bf16.mxu0 0
  %614 = vmatpush1.bf16.msra.mxu0 %v482
  %615 = vmatprep.subr.bf16.mxu0 0
  %616 = vmatpush1.bf16.msra.mxu0 %v483
  %617 = vmatprep.subr.bf16.mxu0 0
  %618 = vmatpush1.bf16.msra.mxu0 %v484
  %619 = vmatprep.subr.bf16.mxu0 0
  %620 = vmatpush1.bf16.msra.mxu0 %v485
  %621 = vmatprep.subr.bf16.mxu0 0
  %622 = vmatpush1.bf16.msra.mxu0 %v486
  %623 = vmatprep.subr.bf16.mxu0 0
  %624 = vmatpush1.bf16.msra.mxu0 %v487
  %625 = vmatprep.subr.bf16.mxu0 0
  %626 = vmatpush1.bf16.msra.mxu0 %v488
  %627 = vmatprep.subr.bf16.mxu0 0
  %628 = vmatpush1.bf16.msra.mxu0 %v489
  %629 = vmatprep.subr.bf16.mxu0 0
  %630 = vmatpush1.bf16.msra.mxu0 %v490
  %631 = vmatprep.subr.bf16.mxu0 0
  %632 = vmatpush1.bf16.msra.mxu0 %v491
  %633 = vmatprep.subr.bf16.mxu0 0
  %634 = vmatpush1.bf16.msra.mxu0 %v492
  %635 = vmatprep.subr.bf16.mxu0 0
  %636 = vmatpush1.bf16.msra.mxu0 %v493
  %637 = vmatprep.subr.bf16.mxu0 0
  %638 = vmatpush1.bf16.msra.mxu0 %v494
  %639 = vmatprep.mubr.bf16.mxu0 %v203
  %640 = vmatmul.mubr.bf16.gmra.mrb[0].mxu0 %v189
  %v641 = vpop.f32.mrb[0].mxu0
  %v642 = vadd.f32 %v163, %v641
  %v643 = vpop.f32.mrb[0].mxu0
  %v644 = vpop.f32.mrb[0].mxu0
  %v645 = vpop.f32.mrb[0].mxu0
  %646 = vdwg.mxu0
  %647 = vmatprep.subr.bf16.mxu0 0
  %648 = vmatpush1.bf16.msra.mxu0 %v495
  %649 = vmatprep.subr.bf16.mxu0 0
  %650 = vmatpush1.bf16.msra.mxu0 %v496
  %651 = vmatprep.subr.bf16.mxu0 0
  %652 = vmatpush1.bf16.msra.mxu0 %v497
  %653 = vmatprep.subr.bf16.mxu0 0
  %654 = vmatpush1.bf16.msra.mxu0 %v498
  %655 = vmatprep.subr.bf16.mxu0 0
  %656 = vmatpush1.bf16.msra.mxu0 %v499
  %657 = vmatprep.subr.bf16.mxu0 0
  %658 = vmatpush1.bf16.msra.mxu0 %v500
  %659 = vmatprep.subr.bf16.mxu0 0
  %660 = vmatpush1.bf16.msra.mxu0 %v501
  %661 = vmatprep.subr.bf16.mxu0 0
  %662 = vmatpush1.bf16.msra.mxu0 %v502
  %663 = vmatprep.subr.bf16.mxu0 0
  %664 = vmatpush1.bf16.msra.mxu0 %v503
  %665 = vmatprep.subr.bf16.mxu0 0
  %666 = vmatpush1.bf16.msra.mxu0 %v504
  %667 = vmatprep.subr.bf16.mxu0 0
  %668 = vmatpush1.bf16.msra.mxu0 %v505
  %669 = vmatprep.subr.bf16.mxu0 0
  %670 = vmatpush1.bf16.msra.mxu0 %v506
  %671 = vmatprep.subr.bf16.mxu0 0
  %672 = vmatpush1.bf16.msra.mxu0 %v507
  %673 = vmatprep.subr.bf16.mxu0 0
  %674 = vmatpush1.bf16.msra.mxu0 %v508
  %675 = vmatprep.subr.bf16.mxu0 0
  %676 = vmatpush1.bf16.msra.mxu0 %v509
  %677 = vmatprep.subr.bf16.mxu0 0
  %678 = vmatpush1.bf16.msra.mxu0 %v510
  %679 = vmatprep.mubr.bf16.mxu0 %v213
  %680 = vmatmul.mubr.bf16.gmra.mrb[0].mxu0 %v211
  %v681 = vpop.f32.mrb[0].mxu0
  %v682 = vadd.f32 %v642, %v681
  %v683 = vpop.f32.mrb[0].mxu0
  %v684 = vpop.f32.mrb[0].mxu0
  %v685 = vpop.f32.mrb[0].mxu0
  %686 = vdwg.mxu0
  %687 = vmatprep.subr.bf16.mxu0 0
  %688 = vmatpush1.bf16.msra.mxu0 %v511
  %689 = vmatprep.subr.bf16.mxu0 0
  %690 = vmatpush1.bf16.msra.mxu0 %v512
  %691 = vmatprep.subr.bf16.mxu0 0
  %692 = vmatpush1.bf16.msra.mxu0 %v513
  %693 = vmatprep.subr.bf16.mxu0 0
  %694 = vmatpush1.bf16.msra.mxu0 %v514
  %695 = vmatprep.subr.bf16.mxu0 0
  %696 = vmatpush1.bf16.msra.mxu0 %v515
  %697 = vmatprep.subr.bf16.mxu0 0
  %698 = vmatpush1.bf16.msra.mxu0 %v516
  %699 = vmatprep.subr.bf16.mxu0 0
  %700 = vmatpush1.bf16.msra.mxu0 %v517
  %701 = vmatprep.subr.bf16.mxu0 0
  %702 = vmatpush1.bf16.msra.mxu0 %v518
  %703 = vmatprep.subr.bf16.mxu0 0
  %704 = vmatpush1.bf16.msra.mxu0 %v519
  %705 = vmatprep.subr.bf16.mxu0 0
  %706 = vmatpush1.bf16.msra.mxu0 %v520
  %707 = vmatprep.subr.bf16.mxu0 0
  %708 = vmatpush1.bf16.msra.mxu0 %v521
  %709 = vmatprep.subr.bf16.mxu0 0
  %710 = vmatpush1.bf16.msra.mxu0 %v522
  %711 = vmatprep.subr.bf16.mxu0 0
  %712 = vmatpush1.bf16.msra.mxu0 %v523
  %713 = vmatprep.subr.bf16.mxu0 0
  %714 = vmatpush1.bf16.msra.mxu0 %v524
  %715 = vmatprep.subr.bf16.mxu0 0
  %716 = vmatpush1.bf16.msra.mxu0 %v525
  %717 = vmatprep.subr.bf16.mxu0 0
  %718 = vmatpush1.bf16.msra.mxu0 %v526
  %719 = vmatprep.mubr.bf16.mxu0 %v210
  %720 = vmatmul.mubr.bf16.gmra.mrb[0].mxu0 %v196
  %v721 = vpop.f32.mrb[0].mxu0
  %v722 = vadd.f32 %v682, %v721
  %v723 = vpop.f32.mrb[0].mxu0
  %v724 = vpop.f32.mrb[0].mxu0
  %v725 = vpop.f32.mrb[0].mxu0
  %726 = vdwg.mxu0
  %727 = vmatprep.subr.bf16.mxu0 0
  %728 = vmatpush1.bf16.msra.mxu0 %v527
  %729 = vmatprep.subr.bf16.mxu0 0
  %730 = vmatpush1.bf16.msra.mxu0 %v528
  %731 = vmatprep.subr.bf16.mxu0 0
  %732 = vmatpush1.bf16.msra.mxu0 %v529
  %733 = vmatprep.subr.bf16.mxu0 0
  %734 = vmatpush1.bf16.msra.mxu0 %v530
  %735 = vmatprep.subr.bf16.mxu0 0
  %736 = vmatpush1.bf16.msra.mxu0 %v531
  %737 = vmatprep.subr.bf16.mxu0 0
  %738 = vmatpush1.bf16.msra.mxu0 %v532
  %739 = vmatprep.subr.bf16.mxu0 0
  %740 = vmatpush1.bf16.msra.mxu0 %v533
  %741 = vmatprep.subr.bf16.mxu0 0
  %742 = vmatpush1.bf16.msra.mxu0 %v534
  %743 = vmatprep.subr.bf16.mxu0 0
  %744 = vmatpush1.bf16.msra.mxu0 %v535
  %745 = vmatprep.subr.bf16.mxu0 0
  %746 = vmatpush1.bf16.msra.mxu0 %v536
  %747 = vmatprep.subr.bf16.mxu0 0
  %748 = vmatpush1.bf16.msra.mxu0 %v537
  %749 = vmatprep.subr.bf16.mxu0 0
  %750 = vmatpush1.bf16.msra.mxu0 %v538
  %751 = vmatprep.subr.bf16.mxu0 0
  %752 = vmatpush1.bf16.msra.mxu0 %v539
  %753 = vmatprep.subr.bf16.mxu0 0
  %754 = vmatpush1.bf16.msra.mxu0 %v540
  %755 = vmatprep.subr.bf16.mxu0 0
  %756 = vmatpush1.bf16.msra.mxu0 %v541
  %757 = vmatprep.subr.bf16.mxu0 0
  %758 = vmatpush1.bf16.msra.mxu0 %v542
  %759 = vmatprep.mubr.bf16.mxu0 %v214
  %760 = vmatmul.mubr.bf16.gmra.mrb[0].mxu0 %v212
  %v761 = vpop.f32.mrb[0].mxu0
  %v762 = vadd.f32 %v722, %v761
  %v763 = vpop.f32.mrb[0].mxu0
  %v764 = vpop.f32.mrb[0].mxu0
  %v765 = vpop.f32.mrb[0].mxu0
  %766 = vdwg.mxu0
  %768 = vrot.lane.b32.xlu0 %v762, 64
  %v769 = vpop.permute.xlu0 %768
  %v771 = vmax.f32 %v762, %v769
  %v772 = vpack.c.bf16 %v771, %v771
  %v773 = vld [vmem:[%s3] sm:$0xf]
  %v774 = vld [vmem:[%s3 + $0x4] sm:$0xf]
  %v775 = vld [vmem:[%s3 + $0x8] sm:$0xf]
  %v776 = vld [vmem:[%s3 + $0xc] sm:$0xf]
  %v777 = vld [vmem:[%s3 + $0x10] sm:$0xf]
  %v778 = vld [vmem:[%s3 + $0x14] sm:$0xf]
  %v779 = vld [vmem:[%s3 + $0x18] sm:$0xf]
  %v780 = vld [vmem:[%s3 + $0x1c] sm:$0xf]
  %v781 = vld [vmem:[%s4] sm:$0x1]
  %v783 = vlaneseq
  %v784 = vshrl.u32 %v783, 7
  %v785 = vsub.s32 0, %v784
  %v786 = vrot.slane %v781, %v785
  %v796 = vunpack.c.l.b16 %v773
  %v797 = vunpack.c.l.b16 %v774
  %v798 = vunpack.c.l.b16 %v775
  %v799 = vunpack.c.l.b16 %v776
  %v800 = vunpack.c.l.b16 %v777
  %v801 = vunpack.c.l.b16 %v778
  %v802 = vunpack.c.l.b16 %v779
  %v803 = vunpack.c.l.b16 %v780
  %v804 = vpack.c.b16 %v797, %v796
  %v805 = vpack.c.b16 %v799, %v798
  %v806 = vpack.c.b16 %v801, %v800
  %v807 = vpack.c.b16 %v803, %v802
  %vm812 = vcmask 523264
  %v814 = vsel %vm812, %v772, 0
  %816 = vmatprep.subr.bf16.mxu0 0
  %817 = vmatpush1.bf16.msra.mxu0 %v804
  %818 = vmatprep.subr.bf16.mxu0 0
  %819 = vmatpush1.bf16.msra.mxu0 %v805
  %820 = vmatprep.subr.bf16.mxu0 0
  %821 = vmatpush1.bf16.msra.mxu0 %v806
  %822 = vmatprep.subr.bf16.mxu0 0
  %823 = vmatpush1.bf16.msra.mxu0 %v807
  %824 = vmatprep.subr.bf16.mxu0 0
  %825 = vmatpush1.bf16.msra.mxu0 0
  %826 = vmatprep.subr.bf16.mxu0 0
  %827 = vmatpush1.bf16.msra.mxu0 0
  %828 = vmatprep.subr.bf16.mxu0 0
  %829 = vmatpush1.bf16.msra.mxu0 0
  %830 = vmatprep.subr.bf16.mxu0 0
  %831 = vmatpush1.bf16.msra.mxu0 0
  %832 = vmatprep.subr.bf16.mxu0 0
  %833 = vmatpush1.bf16.msra.mxu0 0
  %834 = vmatprep.subr.bf16.mxu0 0
  %835 = vmatpush1.bf16.msra.mxu0 0
  %836 = vmatprep.subr.bf16.mxu0 0
  %837 = vmatpush1.bf16.msra.mxu0 0
  %838 = vmatprep.subr.bf16.mxu0 0
  %839 = vmatpush1.bf16.msra.mxu0 0
  %840 = vmatprep.subr.bf16.mxu0 0
  %841 = vmatpush1.bf16.msra.mxu0 0
  %842 = vmatprep.subr.bf16.mxu0 0
  %843 = vmatpush1.bf16.msra.mxu0 0
  %844 = vmatprep.subr.bf16.mxu0 0
  %845 = vmatpush1.bf16.msra.mxu0 0
  %846 = vmatprep.subr.bf16.mxu0 0
  %847 = vmatpush1.bf16.msra.mxu0 0
  %848 = vmatprep.mubr.bf16.mxu0 0
  %849 = vmatmul.mubr.bf16.gmra.mrb[0].mxu0 %v814
  %v850 = vpop.f32.mrb[0].mxu0
  %v851 = vadd.f32 %v786, %v850
  %v852 = vpop.f32.mrb[0].mxu0
  %v853 = vpop.f32.mrb[0].mxu0
  %v854 = vpop.f32.mrb[0].mxu0
  %855 = vdwg.mxu0
  %857 = vrot.lane.b32.xlu0 %v851, 96
  %v858 = vpop.permute.xlu0 %857
  %v860 = vmax.f32 %v851, %v858
  %v861 = vpack.c.bf16 %v860, %v860
  %v862 = vld [vmem:[%s5] sm:$0xf]
  %v863 = vld [vmem:[%s5 + $0x4] sm:$0xf]
  %v864 = vld [vmem:[%s5 + $0x8] sm:$0xf]
  %v865 = vld [vmem:[%s5 + $0xc] sm:$0xf]
  %v866 = vld [vmem:[#allocation2] sm:$0x1]
  %v868 = vlaneseq
  %v869 = vshrl.u32 %v868, 7
  %v870 = vsub.s32 0, %v869
  %v871 = vrot.slane %v866, %v870
  %v877 = vunpack.c.l.b16 %v862
  %v878 = vunpack.c.l.b16 %v863
  %v879 = vunpack.c.l.b16 %v864
  %v880 = vunpack.c.l.b16 %v865
  %v881 = vpack.c.b16 %v878, %v877
  %v882 = vpack.c.b16 %v880, %v879
  %vm885 = vcmask 261120
  %v887 = vsel %vm885, %v861, 0
  %889 = vmatprep.subr.bf16.mxu0 0
  %890 = vmatpush1.bf16.msra.mxu0 %v881
  %891 = vmatprep.subr.bf16.mxu0 0
  %892 = vmatpush1.bf16.msra.mxu0 %v882
  %893 = vmatprep.subr.bf16.mxu0 0
  %894 = vmatpush1.bf16.msra.mxu0 0
  %895 = vmatprep.subr.bf16.mxu0 0
  %896 = vmatpush1.bf16.msra.mxu0 0
  %897 = vmatprep.subr.bf16.mxu0 0
  %898 = vmatpush1.bf16.msra.mxu0 0
  %899 = vmatprep.subr.bf16.mxu0 0
  %900 = vmatpush1.bf16.msra.mxu0 0
  %901 = vmatprep.subr.bf16.mxu0 0
  %902 = vmatpush1.bf16.msra.mxu0 0
  %903 = vmatprep.subr.bf16.mxu0 0
  %904 = vmatpush1.bf16.msra.mxu0 0
  %905 = vmatprep.subr.bf16.mxu0 0
  %906 = vmatpush1.bf16.msra.mxu0 0
  %907 = vmatprep.subr.bf16.mxu0 0
  %908 = vmatpush1.bf16.msra.mxu0 0
  %909 = vmatprep.subr.bf16.mxu0 0
  %910 = vmatpush1.bf16.msra.mxu0 0
  %911 = vmatprep.subr.bf16.mxu0 0
  %912 = vmatpush1.bf16.msra.mxu0 0
  %913 = vmatprep.subr.bf16.mxu0 0
  %914 = vmatpush1.bf16.msra.mxu0 0
  %915 = vmatprep.subr.bf16.mxu0 0
  %916 = vmatpush1.bf16.msra.mxu0 0
  %917 = vmatprep.subr.bf16.mxu0 0
  %918 = vmatpush1.bf16.msra.mxu0 0
  %919 = vmatprep.subr.bf16.mxu0 0
  %920 = vmatpush1.bf16.msra.mxu0 0
  %921 = vmatprep.mubr.bf16.mxu0 0
  %922 = vmatmul.mubr.bf16.gmra.mrb[0].mxu0 %v887
  %v923 = vpop.f32.mrb[0].mxu0
  %v924 = vadd.f32 %v871, %v923
  %v925 = vpop.f32.mrb[0].mxu0
  %v926 = vpop.f32.mrb[0].mxu0
  %v927 = vpop.f32.mrb[0].mxu0
  %928 = vdwg.mxu0
  %v929 = vxor.u32 %v924, 2147483648
  %v930 = vmul.f32 %v929, 1.442695
  %v931 = vpow.pop %v930
  %v932 = vadd.f32 %v931, 1.0
  %v933 = vrcp.pop %v932
  %v934 = vmul.f32 1.0, %v933
  %vm935 = vcmask 1024
  %936 = vst.msk [vmem:[%s7] sm:$0x3] %vm935, %v934
  // Predicated region
  $region30: #{dnet_gf2014_forward.1} parent=0 // pred_check
    _
  $region31: #{dnet_gf2014_forward.1} parent=0 // pred_check_branch
    %938 = sbr.rel (0) target = $region33
  $region32: #{dnet_gf2014_forward.1} parent=0 // pred_region
    _
  $region33: #{dnet_gf2014_forward.1} parent=0 // pred_fallthru
    _
  // Predicated region
  $region34: #{dnet_gf2014_forward.1} parent=0 // pred_check
    _
  $region35: #{dnet_gf2014_forward.1} parent=0 // pred_check_branch
    %940 = sbr.rel (0) target = $region37
  $region36: #{dnet_gf2014_forward.1} parent=0 // pred_region
    _
  $region37: #{dnet_gf2014_forward.1} parent=0 // pred_fallthru
    _

</llo_original>
